<compile_context>
chip_gen: v6e
topology: v6e:2x2x1
jax: 0.10.0
libtpu: 0.0.40
codegen_flags: <defaults>
</compile_context>

<pallas_src>
import functools

import jax
import jax.numpy as jnp
from jax.experimental import pallas as pl
from jax.experimental.pallas import tpu as pltpu


def _round_up(x, multiple):
    return ((x + multiple - 1) // multiple) * multiple


def _am_softmax_rowloss_kernel(scores_ref, target_ref, loss_ref,
                               sum_ref, tsc_ref, *, s, m):
    # scores_ref: (TN, TC) input dtype (f32 or bf16); target_ref: (TN, 1) i32.
    # sum_ref / tsc_ref: (TN, 1) f32 running accumulators across the C grid axis.
    k = pl.program_id(1)

    @pl.when(k == 0)
    def _():
        sum_ref[...] = jnp.zeros_like(sum_ref)
        tsc_ref[...] = jnp.zeros_like(tsc_ref)

    scores = scores_ref[...].astype(jnp.float32)            # upcast per tile
    tgt = target_ref[...]                                    # (TN, 1) i32
    tn, tc = scores.shape

    # Global column index of each lane in this C tile (2-D iota required on TPU).
    col = jax.lax.broadcasted_iota(jnp.int32, (tn, tc), 1) + k * tc
    mask = col == tgt                                        # (TN, TC) bool

    # Unmasked exp over the whole tile (single EUP pass, no second select).
    exp_all = jnp.exp(s * scores)                            # (TN, TC)
    sum_ref[...] += jnp.sum(exp_all, axis=1, keepdims=True)  # XLU row reduce
    # scores[i, target[i]] contribution (zero if the target column is not in
    # this C tile).
    tsc_ref[...] += jnp.sum(jnp.where(mask, scores, 0.0), axis=1, keepdims=True)

    @pl.when(k == pl.num_programs(1) - 1)
    def _():
        t = tsc_ref[...]                                     # (TN, 1)
        numerator = s * (t - m)
        # denominator = exp(numerator) + sum_{j != target} exp(s * scores[:, j])
        denominator = sum_ref[...] - jnp.exp(s * t) + jnp.exp(numerator)
        loss_ref[...] = numerator - jnp.log(denominator)     # per-row loss


class AmSoftmaxLoss:
    """JAX/Pallas port of the PyTorch AmSoftmaxLoss (forward only)."""

    def __init__(self, s=10.0, m=0.2, start_annealing_epoch=0, end_annealing_epoch=0):
        self._s = float(s)
        self._m = 0.0
        self._target_m = float(m)
        self._epoch = -1
        self._start_annealing_epoch = start_annealing_epoch
        self._end_annealing_epoch = end_annealing_epoch
        self.next_epoch()

    def next_epoch(self):
        self._epoch += 1
        if self._epoch >= self._end_annealing_epoch:
            self._m = self._target_m
        elif self._epoch < self._start_annealing_epoch:
            self._m = 0.0
        else:
            diff = self._end_annealing_epoch - self._start_annealing_epoch
            self._m = self._target_m * (self._epoch - self._start_annealing_epoch) / diff

    def __call__(self, scores, target):
        # scores: (N, C) float32 or bfloat16, target: (N,) integer class ids.
        n, c = scores.shape
        target = target.astype(jnp.int32)

        # --- class tile: full extent if small, else 2048-lane tiles ---------
        tc_max = 2048
        if c <= tc_max:
            tc, c_pad = c, c
        else:
            tc = tc_max
            c_pad = _round_up(c, tc)

        # --- batch tile: multiple of 8 sublanes, ~2 MiB f32 block budget ----
        max_tn = max(8, ((2 * 1024 * 1024) // (tc * 4)) // 8 * 8)
        tn = min(256, _round_up(n, 8))
        tn = max(8, min(tn, max_tn))
        n_pad = _round_up(n, tn)

        # Pad classes with a large negative value (exp(s * -1e9) == 0 so padded
        # columns never contribute), then pad batch rows with zeros (they are
        # sliced away before the mean).
        if c_pad != c:
            scores = jnp.pad(scores, ((0, 0), (0, c_pad - c)), constant_values=-1e9)
        if n_pad != n:
            scores = jnp.pad(scores, ((0, n_pad - n), (0, 0)))
            target = jnp.pad(target, (0, n_pad - n))
        target2d = target.reshape(n_pad, 1)

        kernel = functools.partial(_am_softmax_rowloss_kernel, s=self._s, m=self._m)

        per_row = pl.pallas_call(
            kernel,
            out_shape=jax.ShapeDtypeStruct((n_pad, 1), jnp.float32),
            grid_spec=pltpu.PrefetchScalarGridSpec(
                num_scalar_prefetch=0,
                grid=(n_pad // tn, c_pad // tc),
                in_specs=[
                    pl.BlockSpec((tn, tc), lambda i, k: (i, k)),   # scores tile
                    pl.BlockSpec((tn, 1), lambda i, k: (i, 0)),    # target tile
                ],
                out_specs=pl.BlockSpec((tn, 1), lambda i, k: (i, 0)),
                scratch_shapes=[
                    pltpu.VMEM((tn, 1), jnp.float32),   # running sum(exp(s*scores))
                    pltpu.VMEM((tn, 1), jnp.float32),   # running target score
                ],
            ),
            compiler_params=pltpu.CompilerParams(
                dimension_semantics=("parallel", "arbitrary"),
                vmem_limit_bytes=32 * 1024 * 1024,
            ),
        )(scores, target2d)

        # Exclude padded rows; final (tiny) mean reduction in the wrapper.
        return -jnp.mean(per_row[:n, 0])


def _reference(scores, target, s, m):
    n = scores.shape[0]
    scores = scores.astype(jnp.float32)
    t = scores[jnp.arange(n), target]
    numerator = s * (t - m)
    masked = scores.at[jnp.arange(n), target].set(-jnp.inf)
    denominator = jnp.exp(numerator) + jnp.sum(jnp.exp(s * masked), axis=1)
    loss = numerator - jnp.log(denominator)
    return -jnp.mean(loss)


if __name__ == "__main__":
    key = jax.random.PRNGKey(0)
    k1, k2 = jax.random.split(key)

    # N deliberately not a multiple of 8 to exercise the batch-padding path.
    N, C = 10, 32
    scores = jax.random.normal(k1, (N, C), dtype=jnp.float32)
    target = jax.random.randint(k2, (N,), 0, C, dtype=jnp.int32)

    loss_fn = AmSoftmaxLoss(s=10.0, m=0.2)  # m = 0.2 after the ctor's next_epoch()
    out = loss_fn(scores, target)
    out = jax.block_until_ready(out)

    ref = _reference(scores, target, loss_fn._s, loss_fn._m)
    assert jnp.allclose(out, ref, rtol=1e-5, atol=1e-5), (out, ref)

    # Second small check exercising the class-axis tiling / padding path.
    k3, k4 = jax.random.split(k1)
    N2, C2 = 12, 4100            # C > 2048 -> multiple C tiles + -1e9 padding
    scores2 = jax.random.normal(k3, (N2, C2), dtype=jnp.float32)
    target2 = jax.random.randint(k4, (N2,), 0, C2, dtype=jnp.int32)
    out2 = jax.block_until_ready(loss_fn(scores2, target2))
    ref2 = _reference(scores2, target2, loss_fn._s, loss_fn._m)
    assert jnp.allclose(out2, ref2, rtol=1e-5, atol=1e-5), (out2, ref2)

    print("KERNEL_OK")
</pallas_src>

<mosaic_0001>
module attributes {stable_mosaic.version = 11 : i64} {
  func.func @_am_softmax_rowloss_kernel(%arg0: i32, %arg1: i32, %arg2: memref<16x32xf32, #tpu.memory_space<vmem>>, %arg3: memref<16x1xi32, #tpu.memory_space<vmem>>, %arg4: memref<16x1xf32, #tpu.memory_space<vmem>>, %arg5: memref<16x1xf32, #tpu.memory_space<vmem>>, %arg6: memref<16x1xf32, #tpu.memory_space<vmem>>) attributes {dimension_semantics = [#tpu.dimension_semantics<parallel>, #tpu.dimension_semantics<arbitrary>], iteration_bounds = array<i64: 1, 1>, scalar_prefetch = 0 : i64, scratch_operands = 2 : i64, tpu.core_type = #tpu.core_type<tc>, window_params = [{transform_indices = @transform_0, window_bounds = array<i64: 16, 32>}, {transform_indices = @transform_1, window_bounds = array<i64: 16, 1>}, {transform_indices = @transform_2, window_bounds = array<i64: 16, 1>}]} {
    %c0_i32 = arith.constant 0 : i32
    %0 = arith.cmpi eq, %arg1, %c0_i32 : i32
    %1 = arith.extui %0 : i1 to i32
    %c0_i32_0 = arith.constant 0 : i32
    %2 = arith.cmpi ne, %1, %c0_i32_0 : i32
    scf.if %2 {
      %cst_17 = arith.constant 0.000000e+00 : f32
      %29 = vector.broadcast %cst_17 : f32 to vector<16x1xf32>
      %c0_18 = arith.constant 0 : index
      %c0_19 = arith.constant 0 : index
      %30 = vector.load %arg5[%c0_18, %c0_19] : memref<16x1xf32, #tpu.memory_space<vmem>>, vector<16x1xf32>
      tpu.vector_store %arg5[%c0_18, %c0_19], %29 {strides = array<i32>} : memref<16x1xf32, #tpu.memory_space<vmem>>, vector<16x1xf32>,
      %cst_20 = arith.constant 0.000000e+00 : f32
      %31 = vector.broadcast %cst_20 : f32 to vector<16x1xf32>
      %c0_21 = arith.constant 0 : index
      %c0_22 = arith.constant 0 : index
      %32 = vector.load %arg6[%c0_21, %c0_22] : memref<16x1xf32, #tpu.memory_space<vmem>>, vector<16x1xf32>
      tpu.vector_store %arg6[%c0_21, %c0_22], %31 {strides = array<i32>} : memref<16x1xf32, #tpu.memory_space<vmem>>, vector<16x1xf32>,
    } else {
    }
    %c0 = arith.constant 0 : index
    %c0_1 = arith.constant 0 : index
    %3 = vector.load %arg2[%c0, %c0_1] : memref<16x32xf32, #tpu.memory_space<vmem>>, vector<16x32xf32>
    %c0_2 = arith.constant 0 : index
    %c0_3 = arith.constant 0 : index
    %4 = vector.load %arg3[%c0_2, %c0_3] : memref<16x1xi32, #tpu.memory_space<vmem>>, vector<16x1xi32>
    %5 = tpu.iota {dimensions = array<i32: 1>} : vector<16x32xi32>
    %c32_i32 = arith.constant 32 : i32
    %6 = arith.muli %arg1, %c32_i32 : i32
    %7 = vector.broadcast %6 : i32 to vector<16x32xi32>
    %8 = arith.addi %5, %7 : vector<16x32xi32>
    %9 = vector.broadcast %4 : vector<16x1xi32> to vector<16x32xi32>
    %10 = arith.cmpi eq, %8, %9 : vector<16x32xi32>
    %cst = arith.constant 1.000000e+01 : f32
    %11 = vector.broadcast %cst : f32 to vector<16x32xf32>
    %12 = arith.mulf %11, %3 : vector<16x32xf32>
    %13 = math.exp %12 : vector<16x32xf32>
    %c0_4 = arith.constant 0 : index
    %c0_5 = arith.constant 0 : index
    %14 = vector.load %arg5[%c0_4, %c0_5] : memref<16x1xf32, #tpu.memory_space<vmem>>, vector<16x1xf32>
    %cst_6 = arith.constant dense<0.000000e+00> : vector<16xf32>
    %15 = vector.multi_reduction <add>, %13, %cst_6 [1] : vector<16x32xf32> to vector<16xf32>
    %16 = vector.shape_cast %15 : vector<16xf32> to vector<16x1xf32>
    %17 = arith.addf %14, %16 : vector<16x1xf32>
    %c0_7 = arith.constant 0 : index
    %c0_8 = arith.constant 0 : index
    %18 = vector.load %arg5[%c0_7, %c0_8] : memref<16x1xf32, #tpu.memory_space<vmem>>, vector<16x1xf32>
    tpu.vector_store %arg5[%c0_7, %c0_8], %17 {strides = array<i32>} : memref<16x1xf32, #tpu.memory_space<vmem>>, vector<16x1xf32>,
    %c0_9 = arith.constant 0 : index
    %c0_10 = arith.constant 0 : index
    %19 = vector.load %arg6[%c0_9, %c0_10] : memref<16x1xf32, #tpu.memory_space<vmem>>, vector<16x1xf32>
    %cst_11 = arith.constant 0.000000e+00 : f32
    %20 = vector.broadcast %cst_11 : f32 to vector<16x32xf32>
    %21 = arith.select %10, %3, %20 : vector<16x32xi1>, vector<16x32xf32>
    %cst_12 = arith.constant dense<0.000000e+00> : vector<16xf32>
    %22 = vector.multi_reduction <add>, %21, %cst_12 [1] : vector<16x32xf32> to vector<16xf32>
    %23 = vector.shape_cast %22 : vector<16xf32> to vector<16x1xf32>
    %24 = arith.addf %19, %23 : vector<16x1xf32>
    %c0_13 = arith.constant 0 : index
    %c0_14 = arith.constant 0 : index
    %25 = vector.load %arg6[%c0_13, %c0_14] : memref<16x1xf32, #tpu.memory_space<vmem>>, vector<16x1xf32>
    tpu.vector_store %arg6[%c0_13, %c0_14], %24 {strides = array<i32>} : memref<16x1xf32, #tpu.memory_space<vmem>>, vector<16x1xf32>,
    %c0_i32_15 = arith.constant 0 : i32
    %26 = arith.cmpi eq, %arg1, %c0_i32_15 : i32
    %27 = arith.extui %26 : i1 to i32
    %c0_i32_16 = arith.constant 0 : i32
    %28 = arith.cmpi ne, %27, %c0_i32_16 : i32
    scf.if %28 {
      %c0_17 = arith.constant 0 : index
      %c0_18 = arith.constant 0 : index
      %29 = vector.load %arg6[%c0_17, %c0_18] : memref<16x1xf32, #tpu.memory_space<vmem>>, vector<16x1xf32>
      %cst_19 = arith.constant 2.000000e-01 : f32
      %30 = vector.broadcast %cst_19 : f32 to vector<16x1xf32>
      %31 = arith.subf %29, %30 : vector<16x1xf32>
      %cst_20 = arith.constant 1.000000e+01 : f32
      %32 = vector.broadcast %cst_20 : f32 to vector<16x1xf32>
      %33 = arith.mulf %32, %31 : vector<16x1xf32>
      %c0_21 = arith.constant 0 : index
      %c0_22 = arith.constant 0 : index
      %34 = vector.load %arg5[%c0_21, %c0_22] : memref<16x1xf32, #tpu.memory_space<vmem>>, vector<16x1xf32>
      %cst_23 = arith.constant 1.000000e+01 : f32
      %35 = vector.broadcast %cst_23 : f32 to vector<16x1xf32>
      %36 = arith.mulf %35, %29 : vector<16x1xf32>
      %37 = math.exp %36 : vector<16x1xf32>
      %38 = arith.subf %34, %37 : vector<16x1xf32>
      %39 = math.exp %33 : vector<16x1xf32>
      %40 = arith.addf %38, %39 : vector<16x1xf32>
      %41 = math.log %40 : vector<16x1xf32>
      %42 = arith.subf %33, %41 : vector<16x1xf32>
      %c0_24 = arith.constant 0 : index
      %c0_25 = arith.constant 0 : index
      %43 = vector.load %arg4[%c0_24, %c0_25] : memref<16x1xf32, #tpu.memory_space<vmem>>, vector<16x1xf32>
      tpu.vector_store %arg4[%c0_24, %c0_25], %42 {strides = array<i32>} : memref<16x1xf32, #tpu.memory_space<vmem>>, vector<16x1xf32>,
    } else {
    }
    return
  }
  func.func @transform_0(%arg0: i32, %arg1: i32) -> (i32, i32) {
    %c0_i32 = arith.constant 0 : i32
    return %arg0, %arg1 : i32, i32
  }
  func.func @transform_1(%arg0: i32, %arg1: i32) -> (i32, i32) {
    %c0_i32 = arith.constant 0 : i32
    %c0_i32_0 = arith.constant 0 : i32
    return %arg0, %c0_i32 : i32, i32
  }
  func.func @transform_2(%arg0: i32, %arg1: i32) -> (i32, i32) {
    %c0_i32 = arith.constant 0 : i32
    %c0_i32_0 = arith.constant 0 : i32
    return %arg0, %c0_i32 : i32, i32
  }
}

</mosaic_0001>

<llo_original>
// kernel: tpu_custom_call.1
$region0: #{tpu_custom_call.1}
  #allocation0 [shape = 'u32[]', space=smem, size = 0x4, offset = 0x4, fixed_abs, tag = 'smem constant byte address 0x4 - core index']
  #allocation1 [shape = 'u32[144,128]{1,0:T(1,128)}', space=vmem, size = 0x12000, scoped, tag = 'internal scratch']
  #allocation2 [shape = 'f32[16,1]{1,0:T(8,128)}', space=vmem, size = 0x2000, scoped, tag = 'scratch operand']
  #allocation3 [shape = 'f32[16,1]{1,0:T(8,128)}', space=vmem, size = 0x2000, scoped, tag = 'scratch operand']
  %s0 = inlined_call_operand.vmem [shape: f32[16,32], index: 0, kind: input, shape index: {}]
  %s1 = inlined_call_operand.vmem [shape: s32[16,1], index: 1, kind: input, shape index: {}]
  %s2 = inlined_call_operand.vmem [shape: f32[16,1], index: 2, kind: output, shape index: {}]
  %s3 = sld [smem:[#allocation0]]
  $region26: #{tpu_custom_call.1} parent=0
    _
  %s5 = ssub.s32 1, %s3
  %s6 = scalar_select 0, %s5, %s3
  // Predicated region
  $region2: #{tpu_custom_call.1} parent=0 // pred_check
    _
  $region3: #{tpu_custom_call.1} parent=0 // pred_check_branch
    %8 = sbr.rel (0) target = $region5
  $region4: #{tpu_custom_call.1} parent=0 // pred_region
    _
  $region5: #{tpu_custom_call.1} parent=0 // pred_fallthru
    _
  // Predicated region
  $region6: #{tpu_custom_call.1} parent=0 // pred_check
    _
  $region7: #{tpu_custom_call.1} parent=0 // pred_check_branch
    %10 = sbr.rel (0) target = $region9
  $region8: #{tpu_custom_call.1} parent=0 // pred_region
    _
  $region9: #{tpu_custom_call.1} parent=0 // pred_fallthru
    _
  %p11 = scmp.eq.s32.totalorder 0, 0
  // Predicated region
  $region10: #{tpu_custom_call.1} parent=0 // pred_check
    %p12 = pneg %p11
  $region11: #{tpu_custom_call.1} parent=0 // pred_check_branch
    %14 = sbr.rel (%p12) target = $region13
  $region12: #{tpu_custom_call.1} parent=0 // pred_region
    %vm15 = vcmask 7168
    %16 = vst.msk [vmem:[#allocation2] sm:$0xff] %vm15, 0.0
    %17 = vst.msk [vmem:[#allocation2 + $0x8] sm:$0xff] %vm15, 0.0
    %18 = vst.msk [vmem:[#allocation3] sm:$0xff] %vm15, 0.0
    %19 = vst.msk [vmem:[#allocation3 + $0x8] sm:$0xff] %vm15, 0.0
  $region13: #{tpu_custom_call.1} parent=0 // pred_fallthru
    _
  %v20 = vld [vmem:[%s0] sm:$0xff]
  %v21 = vld [vmem:[%s0 + $0x8] sm:$0xff]
  %v22 = vld [vmem:[%s1] sm:$0xff]
  %v23 = vld [vmem:[%s1 + $0x8] sm:$0xff]
  %v24 = vlaneseq
  %v25 = vand.u32 %v24, 127
  %s26 = smul.u32 0, 32
  %v27 = vstv %s26
  %v28 = vadd.s32 %v25, %v27
  %29 = vset.pattern.permute.xlu0 0
  %30 = vperm.xlu0 %29, %v22
  %v31 = vpop.permute.xlu0 %30
  %32 = vset.pattern.permute.xlu0 0
  %33 = vperm.xlu0 %32, %v23
  %v34 = vpop.permute.xlu0 %33
  %vm35 = vcmp.eq.s32.totalorder %v28, %v31
  %vm36 = vcmp.eq.s32.totalorder %v28, %v34
  %v37 = vmul.f32 %v20, 10.0
  %v38 = vmul.f32 %v21, 10.0
  %v39 = vmul.f32 %v37, 1.442695
  %v40 = vpow.pop %v39
  %v41 = vmul.f32 %v38, 1.442695
  %v42 = vpow.pop %v41
  %v43 = vld [vmem:[#allocation2] sm:$0xff]
  %v44 = vld [vmem:[#allocation2 + $0x8] sm:$0xff]
  %vm45 = vcmask 261120
  %v46 = vsel %vm45, %v40, 0.0
  %47 = vadd.xlane.f32.xlu0 %v46
  %v48 = vpop.xlane.xlu0 %47
  %v49 = vsel %vm45, %v42, 0.0
  %50 = vadd.xlane.f32.xlu0 %v49
  %v51 = vpop.xlane.xlu0 %50
  %v52 = vadd.f32 %v43, %v48
  %v53 = vadd.f32 %v44, %v51
  %vm54 = vcmask 7168
  %55 = vst.msk [vmem:[#allocation2] sm:$0xff] %vm54, %v52
  %56 = vst.msk [vmem:[#allocation2 + $0x8] sm:$0xff] %vm54, %v53
  %v57 = vld [vmem:[#allocation3] sm:$0xff]
  %v58 = vld [vmem:[#allocation3 + $0x8] sm:$0xff]
  %v59 = vsel %vm35, %v20, 0.0
  %v60 = vsel %vm36, %v21, 0.0
  %v61 = vsel %vm45, %v59, 0.0
  %62 = vadd.xlane.f32.xlu0 %v61
  %v63 = vpop.xlane.xlu0 %62
  %v64 = vsel %vm45, %v60, 0.0
  %65 = vadd.xlane.f32.xlu0 %v64
  %v66 = vpop.xlane.xlu0 %65
  %v67 = vadd.f32 %v57, %v63
  %v68 = vadd.f32 %v58, %v66
  %69 = vst.msk [vmem:[#allocation3] sm:$0xff] %vm54, %v67
  %70 = vst.msk [vmem:[#allocation3 + $0x8] sm:$0xff] %vm54, %v68
  // Predicated region
  $region14: #{tpu_custom_call.1} parent=0 // pred_check
    %p71 = pneg %p11
  $region15: #{tpu_custom_call.1} parent=0 // pred_check_branch
    %73 = sbr.rel (%p71) target = $region17
  $region16: #{tpu_custom_call.1} parent=0 // pred_region
    %v74 = vld [vmem:[#allocation3] sm:$0xff]
    %v75 = vld [vmem:[#allocation3 + $0x8] sm:$0xff]
    %v76 = vsub.f32 %v74, 0.2
    %v77 = vsub.f32 %v75, 0.2
    %v78 = vmul.f32 %v76, 10.0
    %v79 = vmul.f32 %v77, 10.0
    %v80 = vld [vmem:[#allocation2] sm:$0xff]
    %v81 = vld [vmem:[#allocation2 + $0x8] sm:$0xff]
    %v82 = vmul.f32 %v74, 10.0
    %v83 = vmul.f32 %v75, 10.0
    %v84 = vmul.f32 %v82, 1.442695
    %v85 = vpow.pop %v84
    %v86 = vmul.f32 %v83, 1.442695
    %v87 = vpow.pop %v86
    %v88 = vsub.f32 %v80, %v85
    %v89 = vsub.f32 %v81, %v87
    %v90 = vmul.f32 %v78, 1.442695
    %v91 = vpow.pop %v90
    %v92 = vmul.f32 %v79, 1.442695
    %v93 = vpow.pop %v92
    %v94 = vadd.f32 %v88, %v91
    %v95 = vadd.f32 %v89, %v93
    %v96 = vlog2.pop %v94
    %v97 = vmul.f32 %v96, 0.6931472
    %v98 = vlog2.pop %v95
    %v99 = vmul.f32 %v98, 0.6931472
    %v100 = vsub.f32 %v78, %v97
    %v101 = vsub.f32 %v79, %v99
    %102 = vst.msk [vmem:[%s2] sm:$0xff] %vm54, %v100
    %103 = vst.msk [vmem:[%s2 + $0x8] sm:$0xff] %vm54, %v101
  $region17: #{tpu_custom_call.1} parent=0 // pred_fallthru
    _
  // Predicated region
  $region18: #{tpu_custom_call.1} parent=0 // pred_check
    _
  $region19: #{tpu_custom_call.1} parent=0 // pred_check_branch
    %105 = sbr.rel (0) target = $region21
  $region20: #{tpu_custom_call.1} parent=0 // pred_region
    _
  $region21: #{tpu_custom_call.1} parent=0 // pred_fallthru
    _
  // Predicated region
  $region22: #{tpu_custom_call.1} parent=0 // pred_check
    _
  $region23: #{tpu_custom_call.1} parent=0 // pred_check_branch
    %107 = sbr.rel (0) target = $region25
  $region24: #{tpu_custom_call.1} parent=0 // pred_region
    _
  $region25: #{tpu_custom_call.1} parent=0 // pred_fallthru
    _

</llo_original>
